<compile_context>
chip_gen: v5e
topology: v5e:2x2
jax: 0.10.0
libtpu: 0.0.40
codegen_flags: <defaults>
</compile_context>

<pallas_src>
import functools

import jax
import jax.numpy as jnp
from jax.experimental import pallas as pl
from jax.experimental.pallas import tpu as pltpu


def _silu(x):
    # x * sigmoid(x); the divide goes through the EUP approximate reciprocal.
    return x * pl.reciprocal(1.0 + jnp.exp(-x), approx=True)


def fused_backbone_kernel(slab_ref, temb_ref, wc_ref, bc_ref, wo_ref, bo_ref,
                          out_ref, *, wp):
    # slab_ref: (1, Cin, (TH+3)*Wp) bf16  flat channel-major padded row slab
    # temb_ref: (1, Chid, 1)        f32   pre-computed time embedding (this batch)
    # wc_ref  : (Chid, 9*Cin)       bf16  conv3x3 weight, transposed, tap-major K
    # bc_ref  : (Chid, 1)           f32
    # wo_ref  : (Cin, Chid)         bf16  1x1 conv weight, transposed
    # bo_ref  : (Cin, 1)            f32
    # out_ref : (1, Cin, TH*Wp)     f32   lane-dense output tile (Wp-wide rows)
    n = out_ref.shape[2]                               # TH * Wp (static)
    slab = slab_ref[0]                                 # (Cin, Lp) bf16

    # ---- image encoder: in-kernel transposed im2col + ONE K=9*Cin MXU dot ----
    # Tap (ky, kx) for flattened output position p = i*Wp + j is
    # slab[:, ky*Wp + kx + p]; columns j in {W, W+1} are garbage (wrap into the
    # next row / zero pad) and are stripped by the wrapper.
    taps = [slab[:, ky * wp + kx: ky * wp + kx + n]
            for ky in range(3) for kx in range(3)]
    xcol_t = jnp.concatenate(taps, axis=0)             # (9*Cin, N) bf16

    img_t = jnp.dot(wc_ref[...], xcol_t,
                    preferred_element_type=jnp.float32)  # (Chid, N) f32
    img_t = _silu(img_t + bc_ref[...])                   # lane-dense VPU work

    # ---- final estimator: broadcast-add time embedding + 1x1 conv (natural MXU) ----
    fused = (img_t + temb_ref[0]).astype(jnp.bfloat16)   # (Chid, N)
    out_t = jnp.dot(wo_ref[...], fused,
                    preferred_element_type=jnp.float32)  # (Cin, N)
    out_ref[0] = (out_t + bo_ref[...]).astype(out_ref.dtype)


def _pick_row_tile(H, Wp, target_positions=8192):
    """Largest row tile TH dividing H whose (TH*Wp) tile fits the budget and is
    lane-aligned (multiple of 128) unless it is the whole image."""
    for th in range(H, 0, -1):
        if H % th:
            continue
        if th * Wp > target_positions:
            continue
        if th == H or (th * Wp) % 128 == 0:
            return th
    # TODO(synk): fall back to masked (non-128-aligned) output tiles instead of
    # whole-image blocks when no aligned divisor exists for very large H*Wp.
    return H


def _vmem_limit_bytes():
    """Chip-aware scoped-VMEM limit: physical/2 clamped to [32, 96] MiB."""
    try:
        cap = pltpu.get_tpu_info().vmem_capacity_bytes
    except Exception:
        return None
    return int(min(96 << 20, max(32 << 20, cap // 2)))


def init_params(key, cin, chid):
    ks = jax.random.split(key, 5)
    scale_conv = 1.0 / jnp.sqrt(9.0 * cin)
    scale_lin2 = 1.0 / jnp.sqrt(float(chid))
    scale_out = 1.0 / jnp.sqrt(float(chid))
    return {
        # conv weight laid out (ky, kx, cin, chid) flattened to (9*cin, chid)
        "w_conv": jax.random.normal(ks[0], (9 * cin, chid), jnp.float32) * scale_conv,
        "b_conv": jnp.zeros((1, chid), jnp.float32),
        "w1_t": jax.random.normal(ks[1], (1, chid), jnp.float32),
        "b1_t": jnp.zeros((1, chid), jnp.float32),
        "w2_t": jax.random.normal(ks[2], (chid, chid), jnp.float32) * scale_lin2,
        "b2_t": jnp.zeros((1, chid), jnp.float32),
        "w_out": jax.random.normal(ks[3], (chid, cin), jnp.float32) * scale_out,
        "b_out": jnp.zeros((1, cin), jnp.float32),
    }


@functools.partial(jax.jit, static_argnames=("row_tile",))
def unconditional_diffusion_backbone(x_nchw, t, params, row_tile=None):
    B, Cin, H, W = x_nchw.shape
    Chid = params["w2_t"].shape[0]
    Wp = W + 2                                   # padded row width kept on lanes

    TH = row_tile if row_tile is not None else _pick_row_tile(H, Wp)
    assert H % TH == 0, "row_tile must divide H"
    assert TH == H or (TH * Wp) % 128 == 0, "output tile must be lane-aligned"
    n_tiles = H // TH

    # ---- layout glue: channel-major bf16, pad (top 1, bottom 2, left/right 1),
    #      then flatten rows so conv taps become contiguous lane slices. ----
    x_bf = x_nchw.astype(jnp.bfloat16)
    xp = jnp.pad(x_bf, ((0, 0), (0, 0), (1, 2), (1, 1)))      # (B, Cin, H+3, Wp)
    if n_tiles == 1:
        slabs = xp.reshape(B, Cin, (H + 3) * Wp)
    else:
        # TODO(synk): for very large images replace these halo-duplicated row
        # slabs with manual overlapping-window DMA (memory_space=pl.ANY +
        # pltpu.make_async_copy double-buffering) to avoid the extra HBM pass.
        slabs = jnp.stack(
            [xp[:, :, r * TH:r * TH + TH + 3, :] for r in range(n_tiles)],
            axis=1,
        ).reshape(B * n_tiles, Cin, (TH + 3) * Wp)

    # ---- time encoder hoisted out of the kernel (O(B*Chid^2), trivial) ----
    t2 = t.reshape(B, 1).astype(jnp.float32)
    h_t = jax.nn.silu(t2 * params["w1_t"] + params["b1_t"])    # (B, Chid)
    temb = h_t @ params["w2_t"] + params["b2_t"]               # (B, Chid)
    temb_col = temb.reshape(B, Chid, 1)

    # ---- transposed weights / column biases (resident in VMEM) ----
    wc_t = params["w_conv"].T.astype(jnp.bfloat16)             # (Chid, 9*Cin)
    bc_col = params["b_conv"].reshape(Chid, 1)
    wo_t = params["w_out"].T.astype(jnp.bfloat16)              # (Cin, Chid)
    bo_col = params["b_out"].reshape(Cin, 1)

    out_flat = pl.pallas_call(
        functools.partial(fused_backbone_kernel, wp=Wp),
        out_shape=jax.ShapeDtypeStruct((B, Cin, H * Wp), jnp.float32),
        grid=(B, n_tiles),
        in_specs=[
            pl.BlockSpec((1, Cin, (TH + 3) * Wp),
                         lambda b, r: (b * n_tiles + r, 0, 0)),
            pl.BlockSpec((1, Chid, 1), lambda b, r: (b, 0, 0)),
            pl.BlockSpec((Chid, 9 * Cin), lambda b, r: (0, 0)),
            pl.BlockSpec((Chid, 1), lambda b, r: (0, 0)),
            pl.BlockSpec((Cin, Chid), lambda b, r: (0, 0)),
            pl.BlockSpec((Cin, 1), lambda b, r: (0, 0)),
        ],
        out_specs=pl.BlockSpec((1, Cin, TH * Wp), lambda b, r: (b, 0, r)),
        compiler_params=pltpu.CompilerParams(
            dimension_semantics=("parallel", "parallel"),
            vmem_limit_bytes=_vmem_limit_bytes(),
        ),
    )(slabs, temb_col, wc_t, bc_col, wo_t, bo_col)

    # Strip the 2 garbage columns per row (cheap XLA slice); no transpose needed.
    return out_flat.reshape(B, Cin, H, Wp)[:, :, :, :W]


# ------------------------- pure-JAX reference ------------------------------ #

def reference(x_nchw, t, params):
    B, Cin, H, W = x_nchw.shape
    Chid = params["w2_t"].shape[0]
    x_bf = x_nchw.astype(jnp.bfloat16)
    xp = jnp.pad(x_bf, ((0, 0), (0, 0), (1, 1), (1, 1)))
    cols = [xp[:, :, ky:ky + H, kx:kx + W] for ky in range(3) for kx in range(3)]
    xcol = jnp.stack(cols, axis=1).reshape(B, 9 * Cin, H * W)     # tap-major K
    wc_t = params["w_conv"].T.astype(jnp.bfloat16)                # (Chid, 9*Cin)
    img = jnp.einsum("ok,bkp->bop", wc_t, xcol,
                     preferred_element_type=jnp.float32)
    img = jax.nn.silu(img + params["b_conv"].reshape(1, Chid, 1))
    t2 = t.reshape(B, 1).astype(jnp.float32)
    h = jax.nn.silu(t2 * params["w1_t"] + params["b1_t"])
    temb = h @ params["w2_t"] + params["b2_t"]                    # (B, Chid)
    fused = (img + temb[:, :, None]).astype(jnp.bfloat16)
    wo_t = params["w_out"].T.astype(jnp.bfloat16)                 # (Cin, Chid)
    out = jnp.einsum("ck,bkp->bcp", wo_t, fused,
                     preferred_element_type=jnp.float32)
    out = out + params["b_out"].reshape(1, Cin, 1)
    return out.reshape(B, Cin, H, W)


if __name__ == "__main__":
    B, Cin, H, W = 2, 4, 16, 16
    Chid = 32

    key = jax.random.PRNGKey(0)
    kx_, kt_, kp_, kx2_, kt2_ = jax.random.split(key, 5)
    x = jax.random.normal(kx_, (B, Cin, H, W), jnp.float32)
    t = jax.random.uniform(kt_, (B,), jnp.float32)
    params = init_params(kp_, Cin, Chid)

    # Primary shape: whole 16x16 image per block -> grid (B, 1) = (2, 1).
    out = jax.block_until_ready(unconditional_diffusion_backbone(x, t, params))
    ref = jax.block_until_ready(reference(x, t, params))
    assert out.shape == (B, Cin, H, W)
    assert jnp.allclose(out, ref, rtol=1e-2, atol=2e-2), "mismatch vs JAX reference"

    # Second shape exercising the multi-row-tile path (Wp=32, TH*Wp=256, grid (2,4)).
    H2, W2 = 32, 30
    x2 = jax.random.normal(kx2_, (B, Cin, H2, W2), jnp.float32)
    t2 = jax.random.uniform(kt2_, (B,), jnp.float32)
    out2 = jax.block_until_ready(
        unconditional_diffusion_backbone(x2, t2, params, row_tile=8))
    ref2 = jax.block_until_ready(reference(x2, t2, params))
    assert out2.shape == (B, Cin, H2, W2)
    assert jnp.allclose(out2, ref2, rtol=1e-2, atol=2e-2), "tiled-path mismatch"

    print("KERNEL_OK")
</pallas_src>

<mosaic_0001>
module attributes {stable_mosaic.version = 11 : i64} {
  func.func @fused_backbone_kernel(%arg0: i32, %arg1: i32, %arg2: memref<1x4x342xbf16, #tpu.memory_space<vmem>>, %arg3: memref<1x32x1xf32, #tpu.memory_space<vmem>>, %arg4: memref<32x36xbf16, #tpu.memory_space<vmem>>, %arg5: memref<32x1xf32, #tpu.memory_space<vmem>>, %arg6: memref<4x32xbf16, #tpu.memory_space<vmem>>, %arg7: memref<4x1xf32, #tpu.memory_space<vmem>>, %arg8: memref<1x4x288xf32, #tpu.memory_space<vmem>>) attributes {dimension_semantics = [#tpu.dimension_semantics<parallel>, #tpu.dimension_semantics<parallel>], iteration_bounds = array<i64: 2, 1>, scalar_prefetch = 0 : i64, scratch_operands = 0 : i64, tpu.core_type = #tpu.core_type<tc>, window_params = [{transform_indices = @transform_0, window_bounds = array<i64: 1, 4, 342>}, {transform_indices = @transform_1, window_bounds = array<i64: 1, 32, 1>}, {pipeline_mode = #tpu.pipeline_mode<synchronous>, transform_indices = @transform_2, window_bounds = array<i64: 32, 36>}, {pipeline_mode = #tpu.pipeline_mode<synchronous>, transform_indices = @transform_3, window_bounds = array<i64: 32, 1>}, {pipeline_mode = #tpu.pipeline_mode<synchronous>, transform_indices = @transform_4, window_bounds = array<i64: 4, 32>}, {pipeline_mode = #tpu.pipeline_mode<synchronous>, transform_indices = @transform_5, window_bounds = array<i64: 4, 1>}, {transform_indices = @transform_6, window_bounds = array<i64: 1, 4, 288>}]} {
    %c0 = arith.constant 0 : index
    %c0_0 = arith.constant 0 : index
    %c0_1 = arith.constant 0 : index
    %0 = vector.load %arg2[%c0, %c0_0, %c0_1] : memref<1x4x342xbf16, #tpu.memory_space<vmem>>, vector<1x4x342xbf16>
    %1 = vector.shape_cast %0 : vector<1x4x342xbf16> to vector<4x342xbf16>
    %2 = vector.extract_strided_slice %1 {offsets = [0, 0], sizes = [4, 288], strides = [1, 1]} : vector<4x342xbf16> to vector<4x288xbf16>
    %3 = vector.extract_strided_slice %1 {offsets = [0, 1], sizes = [4, 288], strides = [1, 1]} : vector<4x342xbf16> to vector<4x288xbf16>
    %4 = vector.extract_strided_slice %1 {offsets = [0, 2], sizes = [4, 288], strides = [1, 1]} : vector<4x342xbf16> to vector<4x288xbf16>
    %5 = vector.extract_strided_slice %1 {offsets = [0, 18], sizes = [4, 288], strides = [1, 1]} : vector<4x342xbf16> to vector<4x288xbf16>
    %6 = vector.extract_strided_slice %1 {offsets = [0, 19], sizes = [4, 288], strides = [1, 1]} : vector<4x342xbf16> to vector<4x288xbf16>
    %7 = vector.extract_strided_slice %1 {offsets = [0, 20], sizes = [4, 288], strides = [1, 1]} : vector<4x342xbf16> to vector<4x288xbf16>
    %8 = vector.extract_strided_slice %1 {offsets = [0, 36], sizes = [4, 288], strides = [1, 1]} : vector<4x342xbf16> to vector<4x288xbf16>
    %9 = vector.extract_strided_slice %1 {offsets = [0, 37], sizes = [4, 288], strides = [1, 1]} : vector<4x342xbf16> to vector<4x288xbf16>
    %10 = vector.extract_strided_slice %1 {offsets = [0, 38], sizes = [4, 288], strides = [1, 1]} : vector<4x342xbf16> to vector<4x288xbf16>
    %11 = tpu.concatenate %2, %3, %4, %5, %6, %7, %8, %9, %10 in 0 : vector<4x288xbf16>, vector<4x288xbf16>, vector<4x288xbf16>, vector<4x288xbf16>, vector<4x288xbf16>, vector<4x288xbf16>, vector<4x288xbf16>, vector<4x288xbf16>, vector<4x288xbf16> -> vector<36x288xbf16>
    %c0_2 = arith.constant 0 : index
    %c0_3 = arith.constant 0 : index
    %12 = vector.load %arg4[%c0_2, %c0_3] : memref<32x36xbf16, #tpu.memory_space<vmem>>, vector<32x36xbf16>
    %cst = arith.constant dense<0.000000e+00> : vector<32x288xf32>
    %13 = tpu.matmul %12, %11, %cst {dimension_numbers = #tpu.dot_dimension_numbers<[1], [0], [0], [1], [0, 0, 1, 1], [], []>} : vector<32x36xbf16>, vector<36x288xbf16>, vector<32x288xf32> -> vector<32x288xf32>
    %c0_4 = arith.constant 0 : index
    %c0_5 = arith.constant 0 : index
    %14 = vector.load %arg5[%c0_4, %c0_5] : memref<32x1xf32, #tpu.memory_space<vmem>>, vector<32x1xf32>
    %15 = vector.broadcast %14 : vector<32x1xf32> to vector<32x288xf32>
    %16 = arith.addf %13, %15 : vector<32x288xf32>
    %cst_6 = arith.constant 0.000000e+00 : f32
    %17 = vector.broadcast %cst_6 : f32 to vector<32x288xf32>
    %18 = arith.subf %17, %16 : vector<32x288xf32>
    %19 = math.exp %18 : vector<32x288xf32>
    %cst_7 = arith.constant 1.000000e+00 : f32
    %20 = vector.broadcast %cst_7 : f32 to vector<32x288xf32>
    %21 = arith.addf %20, %19 : vector<32x288xf32>
    %22 = tpu.reciprocal %21 {approx = true} : vector<32x288xf32> -> vector<32x288xf32>
    %23 = arith.mulf %16, %22 : vector<32x288xf32>
    %c0_8 = arith.constant 0 : index
    %c0_9 = arith.constant 0 : index
    %c0_10 = arith.constant 0 : index
    %24 = vector.load %arg3[%c0_8, %c0_9, %c0_10] : memref<1x32x1xf32, #tpu.memory_space<vmem>>, vector<1x32x1xf32>
    %25 = vector.shape_cast %24 : vector<1x32x1xf32> to vector<32x1xf32>
    %26 = vector.broadcast %25 : vector<32x1xf32> to vector<32x288xf32>
    %27 = arith.addf %23, %26 : vector<32x288xf32>
    %28 = arith.truncf %27 : vector<32x288xf32> to vector<32x288xbf16>
    %c0_11 = arith.constant 0 : index
    %c0_12 = arith.constant 0 : index
    %29 = vector.load %arg6[%c0_11, %c0_12] : memref<4x32xbf16, #tpu.memory_space<vmem>>, vector<4x32xbf16>
    %cst_13 = arith.constant dense<0.000000e+00> : vector<4x288xf32>
    %30 = tpu.matmul %29, %28, %cst_13 {dimension_numbers = #tpu.dot_dimension_numbers<[1], [0], [0], [1], [0, 0, 1, 1], [], []>} : vector<4x32xbf16>, vector<32x288xbf16>, vector<4x288xf32> -> vector<4x288xf32>
    %c0_14 = arith.constant 0 : index
    %c0_15 = arith.constant 0 : index
    %31 = vector.load %arg7[%c0_14, %c0_15] : memref<4x1xf32, #tpu.memory_space<vmem>>, vector<4x1xf32>
    %32 = vector.broadcast %31 : vector<4x1xf32> to vector<4x288xf32>
    %33 = arith.addf %30, %32 : vector<4x288xf32>
    %c0_16 = arith.constant 0 : index
    %c0_17 = arith.constant 0 : index
    %c0_18 = arith.constant 0 : index
    %34 = vector.load %arg8[%c0_16, %c0_17, %c0_18] : memref<1x4x288xf32, #tpu.memory_space<vmem>>, vector<1x4x288xf32>
    %35 = vector.shape_cast %34 : vector<1x4x288xf32> to vector<4x288xf32>
    %36 = vector.shape_cast %33 : vector<4x288xf32> to vector<1x4x288xf32>
    tpu.vector_store %arg8[%c0_16, %c0_17, %c0_18], %36 {strides = array<i32>} : memref<1x4x288xf32, #tpu.memory_space<vmem>>, vector<1x4x288xf32>,
    return
  }
  func.func @transform_0(%arg0: i32, %arg1: i32) -> (i32, i32, i32) {
    %c1_i32 = arith.constant 1 : i32
    %0 = arith.muli %arg0, %c1_i32 : i32
    %1 = arith.addi %0, %arg1 : i32
    %c0_i32 = arith.constant 0 : i32
    %c0_i32_0 = arith.constant 0 : i32
    %c0_i32_1 = arith.constant 0 : i32
    return %1, %c0_i32, %c0_i32_0 : i32, i32, i32
  }
  func.func @transform_1(%arg0: i32, %arg1: i32) -> (i32, i32, i32) {
    %c0_i32 = arith.constant 0 : i32
    %c0_i32_0 = arith.constant 0 : i32
    %c0_i32_1 = arith.constant 0 : i32
    return %arg0, %c0_i32, %c0_i32_0 : i32, i32, i32
  }
  func.func @transform_2(%arg0: i32, %arg1: i32) -> (i32, i32) {
    %c0_i32 = arith.constant 0 : i32
    %c0_i32_0 = arith.constant 0 : i32
    %c0_i32_1 = arith.constant 0 : i32
    return %c0_i32, %c0_i32_0 : i32, i32
  }
  func.func @transform_3(%arg0: i32, %arg1: i32) -> (i32, i32) {
    %c0_i32 = arith.constant 0 : i32
    %c0_i32_0 = arith.constant 0 : i32
    %c0_i32_1 = arith.constant 0 : i32
    return %c0_i32, %c0_i32_0 : i32, i32
  }
  func.func @transform_4(%arg0: i32, %arg1: i32) -> (i32, i32) {
    %c0_i32 = arith.constant 0 : i32
    %c0_i32_0 = arith.constant 0 : i32
    %c0_i32_1 = arith.constant 0 : i32
    return %c0_i32, %c0_i32_0 : i32, i32
  }
  func.func @transform_5(%arg0: i32, %arg1: i32) -> (i32, i32) {
    %c0_i32 = arith.constant 0 : i32
    %c0_i32_0 = arith.constant 0 : i32
    %c0_i32_1 = arith.constant 0 : i32
    return %c0_i32, %c0_i32_0 : i32, i32
  }
  func.func @transform_6(%arg0: i32, %arg1: i32) -> (i32, i32, i32) {
    %c0_i32 = arith.constant 0 : i32
    %c0_i32_0 = arith.constant 0 : i32
    return %arg0, %c0_i32, %arg1 : i32, i32, i32
  }
}

</mosaic_0001>

<llo_original>
// kernel: unconditional_diffusion_backbone.1
$region0: #{unconditional_diffusion_backbone.1}
  #allocation0 [shape = 'u32[]', space=smem, size = 0x4, offset = 0x4, fixed_abs, tag = 'smem constant byte address 0x4 - core index']
  #allocation1 [shape = 'u32[72,128]{1,0:T(1,128)}', space=vmem, size = 0x9000, scoped, tag = 'internal scratch']
  %s0 = inlined_call_operand.vmem [shape: bf16[2,4,342], index: 0, kind: input, shape index: {}]
  %s1 = inlined_call_operand.vmem [shape: f32[2,32,1], index: 1, kind: input, shape index: {}]
  %s2 = inlined_call_operand.vmem [shape: bf16[32,36], index: 2, kind: input, shape index: {}]
  %s3 = inlined_call_operand.vmem [shape: f32[32,1], index: 3, kind: input, shape index: {}]
  %s4 = inlined_call_operand.vmem [shape: bf16[4,32], index: 4, kind: input, shape index: {}]
  %s5 = inlined_call_operand.vmem [shape: f32[4,1], index: 5, kind: input, shape index: {}]
  %s6 = inlined_call_operand.vmem [shape: f32[2,4,288], index: 6, kind: output, shape index: {}]
  %s7 = sld [smem:[#allocation0]]
  $region57: #{unconditional_diffusion_backbone.1} parent=0
    _
  %s9 = ssub.s32 1, %s7
  %s10 = scalar_select 0, %s9, %s7
  loop: start=0, step=1, limit=4
  $region2: #{unconditional_diffusion_backbone.1} parent=0 // loop_pre_header
    _
  $region3: #{unconditional_diffusion_backbone.1} parent=0 // loop_header
    %s12 = sphi 0, %s16
    %p13 = scmp.ge.s32.totalorder %s12, 4
    %s19 = sphi 0, %s31
    %s20 = sphi 0, %s27
    %s21 = sphi 0, %s19
    %s22 = sphi 0, %s20
    %s23 = sphi 0, %s21
    %s24 = sphi 0, %s22
    %s36 = sphi 0, %s38
    %s39 = sphi 0, %s36
    %s40 = sphi 0, %s39
    %s56 = sphi 0, %s40
    %s62 = sphi 0, %s64
    %s65 = sphi 0, %s62
    %s66 = sphi 0, %s65
    %s82 = sphi 0, %s66
    %s86 = sphi 0, %s86
    %s88 = sphi 0, %s86
    %s89 = sphi 0, %s88
    %s103 = sphi 0, %s89
    %s107 = sphi 0, %s107
    %s109 = sphi 0, %s107
    %s110 = sphi 0, %s109
    %s124 = sphi 0, %s110
    %s128 = sphi 0, %s128
    %s130 = sphi 0, %s128
    %s131 = sphi 0, %s130
    %s145 = sphi 0, %s131
    %s149 = sphi 0, %s149
    %s151 = sphi 0, %s149
    %s152 = sphi 0, %s151
    %s166 = sphi 0, %s152
    %s174 = sphi 0, %s176
    %s177 = sphi 0, %s174
    %s178 = sphi 0, %s177
    %s194 = sphi 0, %s178
  $region4: #{unconditional_diffusion_backbone.1} parent=0 // loop_header_branch
    %15 = sbr.rel (%p13) target = $region8
  $region5: #{unconditional_diffusion_backbone.1} parent=0 // loop_body
    %s17 = ssub.s32 %s12, 1
    %s18 = ssub.s32 %s12, 2
    %s25 = sadd.s32 1, %s20
    %p26 = scmp.ge.s32.totalorder %s25, 1
    %s27 = scalar_select %p26, 0, %s25
    %s28 = sadd.s32 1, %s19
    %s29 = scalar_select %p26, %s28, %s19
    %p30 = scmp.ge.s32.totalorder %s29, 2
    %s31 = scalar_select %p30, 0, %s29
    %s32 = sadd.s32 %s19, %s20
    %s33 = sadd.s32 %s31, %s27
    %s34 = ssub.s32 %s32, %s33
    %p35 = scmp.eq.s32.totalorder %s34, 0
    %s37 = sadd.s32 %s36, 1
    %s38 = scalar_select %p35, %s36, %s37
    %p41 = pneg %p35
    %p42 = scmp.eq.s32.totalorder %s12, 1
    %p43 = por %p41, %p42
    %p44 = scmp.ne.s32.totalorder %s36, %s39
    %p45 = scmp.eq.s32.totalorder %s12, 0
    %p46 = por %p44, %p45
    %p47 = scmp.ne.s32.totalorder %s36, %s39
    %p48 = scmp.eq.s32.totalorder %s17, 1
    %p49 = por %p47, %p48
    %p50 = scmp.ne.s32.totalorder %s39, %s40
    %p51 = scmp.eq.s32.totalorder %s17, 0
    %p52 = por %p50, %p51
    %p53 = scmp.ne.s32.totalorder %s39, %s40
    %p54 = scmp.eq.s32.totalorder %s18, 1
    %p55 = por %p53, %p54
    %p57 = scmp.ne.s32.totalorder %s40, %s56
    %p58 = scmp.eq.s32.totalorder %s18, 0
    %p59 = por %p57, %p58
    %s60 = ssub.s32 %s19, %s31
    %p61 = scmp.eq.s32.totalorder %s60, 0
    %s63 = sadd.s32 %s62, 1
    %s64 = scalar_select %p61, %s62, %s63
    %p67 = pneg %p61
    %p68 = scmp.eq.s32.totalorder %s12, 1
    %p69 = por %p67, %p68
    %p70 = scmp.ne.s32.totalorder %s62, %s65
    %p71 = scmp.eq.s32.totalorder %s12, 0
    %p72 = por %p70, %p71
    %p73 = scmp.ne.s32.totalorder %s62, %s65
    %p74 = scmp.eq.s32.totalorder %s17, 1
    %p75 = por %p73, %p74
    %p76 = scmp.ne.s32.totalorder %s65, %s66
    %p77 = scmp.eq.s32.totalorder %s17, 0
    %p78 = por %p76, %p77
    %p79 = scmp.ne.s32.totalorder %s65, %s66
    %p80 = scmp.eq.s32.totalorder %s18, 1
    %p81 = por %p79, %p80
    %p83 = scmp.ne.s32.totalorder %s66, %s82
    %p84 = scmp.eq.s32.totalorder %s18, 0
    %p85 = por %p83, %p84
    %s87 = sadd.s32 %s86, 1
    %p90 = scmp.eq.s32.totalorder %s12, 1
    %p91 = scmp.ne.s32.totalorder %s86, %s88
    %p92 = scmp.eq.s32.totalorder %s12, 0
    %p93 = por %p91, %p92
    %p94 = scmp.ne.s32.totalorder %s86, %s88
    %p95 = scmp.eq.s32.totalorder %s17, 1
    %p96 = por %p94, %p95
    %p97 = scmp.ne.s32.totalorder %s88, %s89
    %p98 = scmp.eq.s32.totalorder %s17, 0
    %p99 = por %p97, %p98
    %p100 = scmp.ne.s32.totalorder %s88, %s89
    %p101 = scmp.eq.s32.totalorder %s18, 1
    %p102 = por %p100, %p101
    %p104 = scmp.ne.s32.totalorder %s89, %s103
    %p105 = scmp.eq.s32.totalorder %s18, 0
    %p106 = por %p104, %p105
    %s108 = sadd.s32 %s107, 1
    %p111 = scmp.eq.s32.totalorder %s12, 1
    %p112 = scmp.ne.s32.totalorder %s107, %s109
    %p113 = scmp.eq.s32.totalorder %s12, 0
    %p114 = por %p112, %p113
    %p115 = scmp.ne.s32.totalorder %s107, %s109
    %p116 = scmp.eq.s32.totalorder %s17, 1
    %p117 = por %p115, %p116
    %p118 = scmp.ne.s32.totalorder %s109, %s110
    %p119 = scmp.eq.s32.totalorder %s17, 0
    %p120 = por %p118, %p119
    %p121 = scmp.ne.s32.totalorder %s109, %s110
    %p122 = scmp.eq.s32.totalorder %s18, 1
    %p123 = por %p121, %p122
    %p125 = scmp.ne.s32.totalorder %s110, %s124
    %p126 = scmp.eq.s32.totalorder %s18, 0
    %p127 = por %p125, %p126
    %s129 = sadd.s32 %s128, 1
    %p132 = scmp.eq.s32.totalorder %s12, 1
    %p133 = scmp.ne.s32.totalorder %s128, %s130
    %p134 = scmp.eq.s32.totalorder %s12, 0
    %p135 = por %p133, %p134
    %p136 = scmp.ne.s32.totalorder %s128, %s130
    %p137 = scmp.eq.s32.totalorder %s17, 1
    %p138 = por %p136, %p137
    %p139 = scmp.ne.s32.totalorder %s130, %s131
    %p140 = scmp.eq.s32.totalorder %s17, 0
    %p141 = por %p139, %p140
    %p142 = scmp.ne.s32.totalorder %s130, %s131
    %p143 = scmp.eq.s32.totalorder %s18, 1
    %p144 = por %p142, %p143
    %p146 = scmp.ne.s32.totalorder %s131, %s145
    %p147 = scmp.eq.s32.totalorder %s18, 0
    %p148 = por %p146, %p147
    %s150 = sadd.s32 %s149, 1
    %p153 = scmp.eq.s32.totalorder %s12, 1
    %p154 = scmp.ne.s32.totalorder %s149, %s151
    %p155 = scmp.eq.s32.totalorder %s12, 0
    %p156 = por %p154, %p155
    %p157 = scmp.ne.s32.totalorder %s149, %s151
    %p158 = scmp.eq.s32.totalorder %s17, 1
    %p159 = por %p157, %p158
    %p160 = scmp.ne.s32.totalorder %s151, %s152
    %p161 = scmp.eq.s32.totalorder %s17, 0
    %p162 = por %p160, %p161
    %p163 = scmp.ne.s32.totalorder %s151, %s152
    %p164 = scmp.eq.s32.totalorder %s18, 1
    %p165 = por %p163, %p164
    %p167 = scmp.ne.s32.totalorder %s152, %s166
    %p168 = scmp.eq.s32.totalorder %s18, 0
    %p169 = por %p167, %p168
    %s170 = ssub.s32 %s19, %s31
    %s171 = ssub.s32 %s20, %s27
    %s172 = sor.u32 %s170, %s171
    %p173 = scmp.eq.s32.totalorder %s172, 0
    %s175 = sadd.s32 %s174, 1
    %s176 = scalar_select %p173, %s174, %s175
    %p179 = pneg %p173
    %p180 = scmp.eq.s32.totalorder %s12, 1
    %p181 = por %p179, %p180
    %p182 = scmp.ne.s32.totalorder %s174, %s177
    %p183 = scmp.eq.s32.totalorder %s12, 0
    %p184 = por %p182, %p183
    %p185 = scmp.ne.s32.totalorder %s174, %s177
    %p186 = scmp.eq.s32.totalorder %s17, 1
    %p187 = por %p185, %p186
    %p188 = scmp.ne.s32.totalorder %s177, %s178
    %p189 = scmp.eq.s32.totalorder %s17, 0
    %p190 = por %p188, %p189
    %p191 = scmp.ne.s32.totalorder %s177, %s178
    %p192 = scmp.eq.s32.totalorder %s18, 1
    %p193 = por %p191, %p192
    %p195 = scmp.ne.s32.totalorder %s178, %s194
    %p196 = scmp.eq.s32.totalorder %s18, 0
    %p197 = por %p195, %p196
    %p198 = scmp.le.s32.totalorder 1, %s12
    %p199 = scmp.lt.s32.totalorder %s12, 3
    %p200 = pnand %p198, %p199
    %p201 = pneg %p200
    // Predicated region
    $region9: #{unconditional_diffusion_backbone.1} parent=5 // pred_check
      _
    $region10: #{unconditional_diffusion_backbone.1} parent=5 // pred_check_branch
      %203 = sbr.rel (%p200) target = $region12
    $region11: #{unconditional_diffusion_backbone.1} parent=5 // pred_region
      %s204 = ssub.s32 %s12, 1
      // Predicated region
      $region13: #{unconditional_diffusion_backbone.1} parent=11 // pred_check
        %p205 = pneg %p99
      $region14: #{unconditional_diffusion_backbone.1} parent=11 // pred_check_branch
        %207 = sbr.rel (%p205) target = $region16
      $region15: #{unconditional_diffusion_backbone.1} parent=11 // pred_region
        _
      $region16: #{unconditional_diffusion_backbone.1} parent=11 // pred_fallthru
        _
      // Predicated region
      $region17: #{unconditional_diffusion_backbone.1} parent=11 // pred_check
        %p208 = pneg %p120
      $region18: #{unconditional_diffusion_backbone.1} parent=11 // pred_check_branch
        %210 = sbr.rel (%p208) target = $region20
      $region19: #{unconditional_diffusion_backbone.1} parent=11 // pred_region
        _
      $region20: #{unconditional_diffusion_backbone.1} parent=11 // pred_fallthru
        _
      // Predicated region
      $region21: #{unconditional_diffusion_backbone.1} parent=11 // pred_check
        %p211 = pneg %p141
      $region22: #{unconditional_diffusion_backbone.1} parent=11 // pred_check_branch
        %213 = sbr.rel (%p211) target = $region24
      $region23: #{unconditional_diffusion_backbone.1} parent=11 // pred_region
        _
      $region24: #{unconditional_diffusion_backbone.1} parent=11 // pred_fallthru
        _
      // Predicated region
      $region25: #{unconditional_diffusion_backbone.1} parent=11 // pred_check
        %p214 = pneg %p162
      $region26: #{unconditional_diffusion_backbone.1} parent=11 // pred_check_branch
        %216 = sbr.rel (%p214) target = $region28
      $region27: #{unconditional_diffusion_backbone.1} parent=11 // pred_region
        _
      $region28: #{unconditional_diffusion_backbone.1} parent=11 // pred_fallthru
        _
    $region12: #{unconditional_diffusion_backbone.1} parent=5 // pred_fallthru
      _
    %p217 = scmp.lt.s32.totalorder %s12, 2
    // Predicated region
    $region29: #{unconditional_diffusion_backbone.1} parent=5 // pred_check
      %p218 = pneg %p217
    $region30: #{unconditional_diffusion_backbone.1} parent=5 // pred_check_branch
      %220 = sbr.rel (%p218) target = $region32
    $region31: #{unconditional_diffusion_backbone.1} parent=5 // pred_region
      // Predicated region
      $region33: #{unconditional_diffusion_backbone.1} parent=31 // pred_check
        %p221 = pneg %p46
      $region34: #{unconditional_diffusion_backbone.1} parent=31 // pred_check_branch
        %223 = sbr.rel (%p221) target = $region36
      $region35: #{unconditional_diffusion_backbone.1} parent=31 // pred_region
        %s224 = sadd.s32 %s19, %s20
        %p225 = scmp.lt.s32.totalorder %s224, 1
        %s226 = scalar_select %p225, %s224, 1
        %s227 = smul.addr %s226, 3
        %s228 = smul.addr %s227, 2
        %s229 = scalar_lea.vmem %s0, %s228
        %s230 = sadd.s32 %s19, %s20
      $region36: #{unconditional_diffusion_backbone.1} parent=31 // pred_fallthru
        _
      // Predicated region
      $region37: #{unconditional_diffusion_backbone.1} parent=31 // pred_check
        %p231 = pneg %p72
      $region38: #{unconditional_diffusion_backbone.1} parent=31 // pred_check_branch
        %233 = sbr.rel (%p231) target = $region40
      $region39: #{unconditional_diffusion_backbone.1} parent=31 // pred_region
        %p234 = scmp.lt.s32.totalorder %s19, 1
        %s235 = scalar_select %p234, %s19, 1
        %s236 = smul.addr %s235, 4
        %s237 = smul.addr %s236, 8
        %s238 = scalar_lea.vmem %s1, %s237
      $region40: #{unconditional_diffusion_backbone.1} parent=31 // pred_fallthru
        _
    $region32: #{unconditional_diffusion_backbone.1} parent=5 // pred_fallthru
      _
    %p239 = scmp.le.s32.totalorder 1, %s12
    %p240 = scmp.lt.s32.totalorder %s12, 3
    %p241 = pnand %p239, %p240
    %p242 = pneg %p241
    // Predicated region
    $region41: #{unconditional_diffusion_backbone.1} parent=5 // pred_check
      _
    $region42: #{unconditional_diffusion_backbone.1} parent=5 // pred_check_branch
      %244 = sbr.rel (%p241) target = $region44
    $region43: #{unconditional_diffusion_backbone.1} parent=5 // pred_region
      %s245 = ssub.s32 %s12, 1
      %s246 = sadd.s32 %s21, %s22
      %p247 = scmp.lt.s32.totalorder %s246, 1
      %s248 = scalar_select %p247, %s246, 1
      %s249 = smul.addr %s248, 3
      %s250 = smul.addr %s249, 2
      %s251 = scalar_lea.vmem %s0, %s250
      %p252 = pneg %p52
      %p253 = pneg %p49
      %p254 = scmp.lt.s32.totalorder %s21, 1
      %s255 = scalar_select %p254, %s21, 1
      %s256 = smul.addr %s255, 4
      %s257 = smul.addr %s256, 8
      %s258 = scalar_lea.vmem %s1, %s257
      %p259 = pneg %p78
      %p260 = pneg %p75
      %p261 = pneg %p99
      %p262 = pneg %p96
      %p263 = pneg %p120
      %p264 = pneg %p117
      %p265 = pneg %p141
      %p266 = pneg %p138
      %p267 = pneg %p162
      %p268 = pneg %p159
      %p269 = pneg %p190
      %p270 = pneg %p187
      %s271 = smul.u32 3, %s22
      %p272 = scmp.lt.s32.totalorder %s21, 1
      %s273 = scalar_select %p272, %s21, 1
      %p274 = scmp.lt.s32.totalorder %s271, 2
      %s275 = scalar_select %p274, %s271, 2
      %s276 = smul.addr %s273, 3
      %s277 = sadd.s32 %s275, %s276
      %s278 = smul.addr %s277, 4
      %s279 = scalar_lea.vmem %s6, %s278
      %s280 = sadd.s32 %s21, %s22
      %p281 = scmp.lt.s32.totalorder %s280, 1
      %s282 = scalar_select %p281, %s280, 1
      %s283 = smul.addr %s282, 3
      %s284 = smul.addr %s283, 2
      %s285 = scalar_lea.vmem %s0, %s284
      %s286 = sadd.s32 %s21, %s22
      %p287 = scmp.lt.s32.totalorder %s21, 1
      %s288 = scalar_select %p287, %s21, 1
      %s289 = smul.addr %s288, 4
      %s290 = smul.addr %s289, 8
      %s291 = scalar_lea.vmem %s1, %s290
      %s292 = smul.u32 3, %s22
      %p293 = scmp.lt.s32.totalorder %s21, 1
      %s294 = scalar_select %p293, %s21, 1
      %p295 = scmp.lt.s32.totalorder %s292, 2
      %s296 = scalar_select %p295, %s292, 2
      %s297 = smul.addr %s294, 3
      %s298 = sadd.s32 %s296, %s297
      %s299 = smul.addr %s298, 4
      %s300 = scalar_lea.vmem %s6, %s299
      %s301 = smul.u32 3, %s22
      %v303 = vld [vmem:[%s285] sm:$0x3f]
      %305 = vst [vmem:[#allocation1] ss:$4 sm:$0xff] %v303
      %v306 = vld.sshfl [vmem:[#allocation1] sm:$0xff pattern:$0x73625140]
      %v307 = vld.sshfl [vmem:[#allocation1 + $0x8] sm:$0xff pattern:$0x73625140]
      %v308 = vld.sshfl [vmem:[#allocation1 + $0x10] sm:$0xff pattern:$0x73625140]
      %s309 = scalar_lea.vmem [#allocation1], 1
      %310 = vst [vmem:[%s309] ss:$4 sm:$0xff] %v303
      %v311 = vld.sshfl [vmem:[#allocation1] sm:$0xff pattern:$0x73625140]
      %v313 = vld.sshfl [vmem:[#allocation1 + $0x8] sm:$0xff pattern:$0x73625140]
      %v315 = vld.sshfl [vmem:[#allocation1 + $0x10] sm:$0xff pattern:$0x73625140]
      %317 = vrot.lane.b32.xlu0 %v311, 127
      %v318 = vpop.permute.xlu0 %317
      %319 = vrot.lane.b32.xlu0 %v313, 127
      %v320 = vpop.permute.xlu0 %319
      %321 = vrot.lane.b32.xlu0 %v315, 127
      %v322 = vpop.permute.xlu0 %321
      %vm323 = vcmask 1039360
      %v324 = vsel %vm323, %v318, %v320
      %v325 = vsel %vm323, %v320, %v322
      %s326 = scalar_lea.vmem [#allocation1], 2
      %327 = vst [vmem:[%s326] ss:$4 sm:$0xff] %v303
      %v328 = vld.sshfl [vmem:[#allocation1] sm:$0xff pattern:$0x73625140]
      %v330 = vld.sshfl [vmem:[#allocation1 + $0x8] sm:$0xff pattern:$0x73625140]
      %v332 = vld.sshfl [vmem:[#allocation1 + $0x10] sm:$0xff pattern:$0x73625140]
      %334 = vrot.lane.b32.xlu0 %v328, 126
      %v335 = vpop.permute.xlu0 %334
      %336 = vrot.lane.b32.xlu0 %v330, 126
      %v337 = vpop.permute.xlu0 %336
      %338 = vrot.lane.b32.xlu0 %v332, 126
      %v339 = vpop.permute.xlu0 %338
      %vm340 = vcmask 1031168
      %v341 = vsel %vm340, %v335, %v337
      %v342 = vsel %vm340, %v337, %v339
      %s343 = scalar_lea.vmem [#allocation1], 3
      %344 = vst [vmem:[%s343] ss:$4 sm:$0xff] %v303
      %v345 = vld.sshfl [vmem:[#allocation1] sm:$0xff pattern:$0x73625140]
      %v347 = vld.sshfl [vmem:[#allocation1 + $0x8] sm:$0xff pattern:$0x73625140]
      %v349 = vld.sshfl [vmem:[#allocation1 + $0x10] sm:$0xff pattern:$0x73625140]
      %351 = vrot.lane.b32.xlu0 %v345, 110
      %v352 = vpop.permute.xlu0 %351
      %353 = vrot.lane.b32.xlu0 %v347, 110
      %v354 = vpop.permute.xlu0 %353
      %355 = vrot.lane.b32.xlu0 %v349, 110
      %v356 = vpop.permute.xlu0 %355
      %vm357 = vcmask 900096
      %v358 = vsel %vm357, %v352, %v354
      %v359 = vsel %vm357, %v354, %v356
      %360 = vst [vmem:[#allocation1] ss:$4 sm:$0xff] %v303
      %v361 = vld.sshfl [vmem:[#allocation1] sm:$0xff pattern:$0x73625140]
      %v363 = vld.sshfl [vmem:[#allocation1 + $0x8] sm:$0xff pattern:$0x73625140]
      %v365 = vld.sshfl [vmem:[#allocation1 + $0x10] sm:$0xff pattern:$0x73625140]
      %367 = vrot.lane.b32.xlu0 %v361, 109
      %v368 = vpop.permute.xlu0 %367
      %369 = vrot.lane.b32.xlu0 %v363, 109
      %v370 = vpop.permute.xlu0 %369
      %371 = vrot.lane.b32.xlu0 %v365, 109
      %v372 = vpop.permute.xlu0 %371
      %vm373 = vcmask 891904
      %v374 = vsel %vm373, %v368, %v370
      %v375 = vsel %vm373, %v370, %v372
      %s376 = scalar_lea.vmem [#allocation1], 1
      %377 = vst [vmem:[%s376] ss:$4 sm:$0xff] %v303
      %v378 = vld.sshfl [vmem:[#allocation1] sm:$0xff pattern:$0x73625140]
      %v380 = vld.sshfl [vmem:[#allocation1 + $0x8] sm:$0xff pattern:$0x73625140]
      %v382 = vld.sshfl [vmem:[#allocation1 + $0x10] sm:$0xff pattern:$0x73625140]
      %384 = vrot.lane.b32.xlu0 %v378, 108
      %v385 = vpop.permute.xlu0 %384
      %386 = vrot.lane.b32.xlu0 %v380, 108
      %v387 = vpop.permute.xlu0 %386
      %388 = vrot.lane.b32.xlu0 %v382, 108
      %v389 = vpop.permute.xlu0 %388
      %vm390 = vcmask 883712
      %v391 = vsel %vm390, %v385, %v387
      %v392 = vsel %vm390, %v387, %v389
      %s393 = scalar_lea.vmem [#allocation1], 2
      %394 = vst [vmem:[%s393] ss:$4 sm:$0xff] %v303
      %v395 = vld.sshfl [vmem:[#allocation1] sm:$0xff pattern:$0x73625140]
      %v397 = vld.sshfl [vmem:[#allocation1 + $0x8] sm:$0xff pattern:$0x73625140]
      %v399 = vld.sshfl [vmem:[#allocation1 + $0x10] sm:$0xff pattern:$0x73625140]
      %401 = vrot.lane.b32.xlu0 %v395, 92
      %v402 = vpop.permute.xlu0 %401
      %403 = vrot.lane.b32.xlu0 %v397, 92
      %v404 = vpop.permute.xlu0 %403
      %405 = vrot.lane.b32.xlu0 %v399, 92
      %v406 = vpop.permute.xlu0 %405
      %vm407 = vcmask 752640
      %v408 = vsel %vm407, %v402, %v404
      %v409 = vsel %vm407, %v404, %v406
      %s410 = scalar_lea.vmem [#allocation1], 3
      %411 = vst [vmem:[%s410] ss:$4 sm:$0xff] %v303
      %v412 = vld.sshfl [vmem:[#allocation1] sm:$0xff pattern:$0x73625140]
      %v414 = vld.sshfl [vmem:[#allocation1 + $0x8] sm:$0xff pattern:$0x73625140]
      %v416 = vld.sshfl [vmem:[#allocation1 + $0x10] sm:$0xff pattern:$0x73625140]
      %418 = vrot.lane.b32.xlu0 %v412, 91
      %v419 = vpop.permute.xlu0 %418
      %420 = vrot.lane.b32.xlu0 %v414, 91
      %v421 = vpop.permute.xlu0 %420
      %422 = vrot.lane.b32.xlu0 %v416, 91
      %v423 = vpop.permute.xlu0 %422
      %vm424 = vcmask 744448
      %v425 = vsel %vm424, %v419, %v421
      %v426 = vsel %vm424, %v421, %v423
      %427 = vst [vmem:[#allocation1] ss:$4 sm:$0xff] %v303
      %v428 = vld.sshfl [vmem:[#allocation1] sm:$0xff pattern:$0x73625140]
      %v430 = vld.sshfl [vmem:[#allocation1 + $0x8] sm:$0xff pattern:$0x73625140]
      %v432 = vld.sshfl [vmem:[#allocation1 + $0x10] sm:$0xff pattern:$0x73625140]
      %434 = vrot.lane.b32.xlu0 %v428, 90
      %v435 = vpop.permute.xlu0 %434
      %436 = vrot.lane.b32.xlu0 %v430, 90
      %v437 = vpop.permute.xlu0 %436
      %438 = vrot.lane.b32.xlu0 %v432, 90
      %v439 = vpop.permute.xlu0 %438
      %vm440 = vcmask 736256
      %v441 = vsel %vm440, %v435, %v437
      %v442 = vsel %vm440, %v437, %v439
      %vm443 = vcmask 1041408
      %v445 = vsel %vm443, %v306, %v324
      %v447 = vsel %vm443, %v307, %v325
      %v449 = vsel %vm443, %v308, %v322
      %vm450 = vcmask 1043456
      %v452 = vsel %vm450, %v445, %v341
      %v454 = vsel %vm450, %v447, %v342
      %v456 = vsel %vm450, %v449, %v339
      %vm457 = vcmask 1045504
      %v459 = vsel %vm457, %v452, %v358
      %v462 = vsel %vm457, %v454, %v359
      %v465 = vsel %vm457, %v456, %v356
      %v469 = vsel %vm443, %v374, %v391
      %v472 = vsel %vm443, %v375, %v392
      %v475 = vsel %vm443, %v372, %v389
      %v477 = vsel %vm450, %v469, %v408
      %v479 = vsel %vm450, %v472, %v409
      %v481 = vsel %vm450, %v475, %v406
      %v483 = vsel %vm457, %v477, %v425
      %v486 = vsel %vm457, %v479, %v426
      %v489 = vsel %vm457, %v481, %v423
      %v491 = vld [vmem:[%s2] sm:$0xf]
      %v492 = vld [vmem:[%s2 + $0x4] sm:$0xf]
      %v493 = vld [vmem:[%s2 + $0x8] sm:$0xf]
      %v494 = vld [vmem:[%s2 + $0xc] sm:$0xf]
      %v495 = vld [vmem:[%s3] sm:$0xff]
      %v496 = vld [vmem:[%s3 + $0x8] sm:$0xff]
      %v497 = vld [vmem:[%s3 + $0x10] sm:$0xff]
      %v498 = vld [vmem:[%s3 + $0x18] sm:$0xff]
      %500 = vset.pattern.permute.xlu0 0
      %501 = vperm.xlu0 %500, %v495
      %v502 = vpop.permute.xlu0 %501
      %505 = vset.pattern.permute.xlu0 0
      %506 = vperm.xlu0 %505, %v496
      %v507 = vpop.permute.xlu0 %506
      %510 = vset.pattern.permute.xlu0 0
      %511 = vperm.xlu0 %510, %v497
      %v512 = vpop.permute.xlu0 %511
      %515 = vset.pattern.permute.xlu0 0
      %516 = vperm.xlu0 %515, %v498
      %v517 = vpop.permute.xlu0 %516
      %v523 = vunpack.c.l.b16 %v491
      %v524 = vunpack.c.l.b16 %v492
      %v525 = vunpack.c.l.b16 %v493
      %v526 = vunpack.c.l.b16 %v494
      %v527 = vpack.c.b16 %v524, %v523
      %v528 = vpack.c.b16 %v526, %v525
      %vm529 = vcmask 293888
      %v531 = vsel %vm529, %v527, 0
      %v534 = vsel %vm529, %v528, 0
      %v537 = vsel %vm443, %v441, 0
      %v540 = vsel %vm443, %v442, 0
      %v543 = vsel %vm443, %v439, 0
      %545 = vmatpush.bf16.msra.mxu0 0
      %546 = vmatpush.bf16.msra.mxu0 0
      %547 = vmatpush.bf16.msra.mxu0 0
      %548 = vmatpush.bf16.msra.mxu0 0
      %549 = vmatpush.bf16.msra.mxu0 0
      %550 = vmatpush.bf16.msra.mxu0 %v537
      %551 = vmatpush.bf16.msra.mxu0 %v483
      %552 = vmatpush.bf16.msra.mxu0 %v459
      %553 = vmatmul.bf16.gmra.mxu0 %v531
      %v554 = vpop.f32.mrf.mxu0
      %v555 = vadd.f32 %v502, %v554
      %v556 = vpop.f32.mrf.mxu0
      %v557 = vadd.f32 %v507, %v556
      %558 = vmatmul.bf16.gmra.mxu0 %v534
      %v559 = vpop.f32.mrf.mxu0
      %v560 = vadd.f32 %v512, %v559
      %v561 = vpop.f32.mrf.mxu0
      %v562 = vadd.f32 %v517, %v561
      %563 = vdwg.mxu0
      %564 = vmatpush.bf16.msra.mxu0 0
      %565 = vmatpush.bf16.msra.mxu0 0
      %566 = vmatpush.bf16.msra.mxu0 0
      %567 = vmatpush.bf16.msra.mxu0 0
      %568 = vmatpush.bf16.msra.mxu0 0
      %569 = vmatpush.bf16.msra.mxu0 %v540
      %570 = vmatpush.bf16.msra.mxu0 %v486
      %571 = vmatpush.bf16.msra.mxu0 %v462
      %572 = vmatmul.bf16.gmra.mxu0 %v531
      %v573 = vpop.f32.mrf.mxu0
      %v574 = vadd.f32 %v502, %v573
      %v575 = vpop.f32.mrf.mxu0
      %v576 = vadd.f32 %v507, %v575
      %577 = vmatmul.bf16.gmra.mxu0 %v534
      %v578 = vpop.f32.mrf.mxu0
      %v579 = vadd.f32 %v512, %v578
      %v580 = vpop.f32.mrf.mxu0
      %v581 = vadd.f32 %v517, %v580
      %582 = vdwg.mxu0
      %583 = vmatpush.bf16.msra.mxu0 0
      %584 = vmatpush.bf16.msra.mxu0 0
      %585 = vmatpush.bf16.msra.mxu0 0
      %586 = vmatpush.bf16.msra.mxu0 0
      %587 = vmatpush.bf16.msra.mxu0 0
      %588 = vmatpush.bf16.msra.mxu0 %v543
      %589 = vmatpush.bf16.msra.mxu0 %v489
      %590 = vmatpush.bf16.msra.mxu0 %v465
      %591 = vmatmul.bf16.gmra.mxu0 %v531
      %v592 = vpop.f32.mrf.mxu0
      %v593 = vadd.f32 %v502, %v592
      %v594 = vpop.f32.mrf.mxu0
      %v595 = vadd.f32 %v507, %v594
      %596 = vmatmul.bf16.gmra.mxu0 %v534
      %v597 = vpop.f32.mrf.mxu0
      %v598 = vadd.f32 %v512, %v597
      %v599 = vpop.f32.mrf.mxu0
      %v600 = vadd.f32 %v517, %v599
      %601 = vdwg.mxu0
      %v602 = vsub.f32 0.0, %v555
      %v603 = vsub.f32 0.0, %v574
      %v604 = vsub.f32 0.0, %v593
      %v605 = vsub.f32 0.0, %v557
      %v606 = vsub.f32 0.0, %v576
      %v607 = vsub.f32 0.0, %v595
      %v608 = vsub.f32 0.0, %v560
      %v609 = vsub.f32 0.0, %v579
      %v610 = vsub.f32 0.0, %v598
      %v611 = vsub.f32 0.0, %v562
      %v612 = vsub.f32 0.0, %v581
      %v613 = vsub.f32 0.0, %v600
      %v614 = vmul.f32 %v602, 1.442695
      %v615 = vpow.pop %v614
      %v616 = vmul.f32 %v603, 1.442695
      %v617 = vpow.pop %v616
      %v618 = vmul.f32 %v604, 1.442695
      %v619 = vpow.pop %v618
      %v620 = vmul.f32 %v605, 1.442695
      %v621 = vpow.pop %v620
      %v622 = vmul.f32 %v606, 1.442695
      %v623 = vpow.pop %v622
      %v624 = vmul.f32 %v607, 1.442695
      %v625 = vpow.pop %v624
      %v626 = vmul.f32 %v608, 1.442695
      %v627 = vpow.pop %v626
      %v628 = vmul.f32 %v609, 1.442695
      %v629 = vpow.pop %v628
      %v630 = vmul.f32 %v610, 1.442695
      %v631 = vpow.pop %v630
      %v632 = vmul.f32 %v611, 1.442695
      %v633 = vpow.pop %v632
      %v634 = vmul.f32 %v612, 1.442695
      %v635 = vpow.pop %v634
      %v636 = vmul.f32 %v613, 1.442695
      %v637 = vpow.pop %v636
      %v638 = vadd.f32 %v615, 1.0
      %v639 = vadd.f32 %v617, 1.0
      %v640 = vadd.f32 %v619, 1.0
      %v641 = vadd.f32 %v621, 1.0
      %v642 = vadd.f32 %v623, 1.0
      %v643 = vadd.f32 %v625, 1.0
      %v644 = vadd.f32 %v627, 1.0
      %v645 = vadd.f32 %v629, 1.0
      %v646 = vadd.f32 %v631, 1.0
      %v647 = vadd.f32 %v633, 1.0
      %v648 = vadd.f32 %v635, 1.0
      %v649 = vadd.f32 %v637, 1.0
      %v650 = vrcp.pop %v638
      %v651 = vrcp.pop %v639
      %v652 = vrcp.pop %v640
      %v653 = vrcp.pop %v641
      %v654 = vrcp.pop %v642
      %v655 = vrcp.pop %v643
      %v656 = vrcp.pop %v644
      %v657 = vrcp.pop %v645
      %v658 = vrcp.pop %v646
      %v659 = vrcp.pop %v647
      %v660 = vrcp.pop %v648
      %v661 = vrcp.pop %v649
      %v662 = vmul.f32 %v555, %v650
      %v663 = vmul.f32 %v574, %v651
      %v664 = vmul.f32 %v593, %v652
      %v665 = vmul.f32 %v557, %v653
      %v666 = vmul.f32 %v576, %v654
      %v667 = vmul.f32 %v595, %v655
      %v668 = vmul.f32 %v560, %v656
      %v669 = vmul.f32 %v579, %v657
      %v670 = vmul.f32 %v598, %v658
      %v671 = vmul.f32 %v562, %v659
      %v672 = vmul.f32 %v581, %v660
      %v673 = vmul.f32 %v600, %v661
      %v674 = vld [vmem:[%s291] sm:$0xff]
      %v675 = vld [vmem:[%s291 + $0x8] sm:$0xff]
      %v676 = vld [vmem:[%s291 + $0x10] sm:$0xff]
      %v677 = vld [vmem:[%s291 + $0x18] sm:$0xff]
      %679 = vset.pattern.permute.xlu0 0
      %680 = vperm.xlu0 %679, %v674
      %v681 = vpop.permute.xlu0 %680
      %684 = vset.pattern.permute.xlu0 0
      %685 = vperm.xlu0 %684, %v675
      %v686 = vpop.permute.xlu0 %685
      %689 = vset.pattern.permute.xlu0 0
      %690 = vperm.xlu0 %689, %v676
      %v691 = vpop.permute.xlu0 %690
      %694 = vset.pattern.permute.xlu0 0
      %695 = vperm.xlu0 %694, %v677
      %v696 = vpop.permute.xlu0 %695
      %v698 = vadd.f32 %v662, %v681
      %v699 = vadd.f32 %v663, %v681
      %v700 = vadd.f32 %v664, %v681
      %v701 = vadd.f32 %v665, %v686
      %v702 = vadd.f32 %v666, %v686
      %v703 = vadd.f32 %v667, %v686
      %v704 = vadd.f32 %v668, %v691
      %v705 = vadd.f32 %v669, %v691
      %v706 = vadd.f32 %v670, %v691
      %v707 = vadd.f32 %v671, %v696
      %v708 = vadd.f32 %v672, %v696
      %v709 = vadd.f32 %v673, %v696
      %v710 = vpack.c.bf16 %v701, %v698
      %v711 = vpack.c.bf16 %v702, %v699
      %v712 = vpack.c.bf16 %v703, %v700
      %v713 = vpack.c.bf16 %v707, %v704
      %v714 = vpack.c.bf16 %v708, %v705
      %v715 = vpack.c.bf16 %v709, %v706
      %v716 = vld [vmem:[%s4] sm:$0x3]
      %v717 = vld [vmem:[%s5] sm:$0xf]
      %719 = vset.pattern.permute.xlu0 0
      %720 = vperm.xlu0 %719, %v717
      %v721 = vpop.permute.xlu0 %720
      %vm723 = vcmask 261120
      %v725 = vsel %vm723, %v716, 0
      %727 = vmatpush.bf16.msra.mxu0 0
      %728 = vmatpush.bf16.msra.mxu0 0
      %729 = vmatpush.bf16.msra.mxu0 0
      %730 = vmatpush.bf16.msra.mxu0 0
      %731 = vmatpush.bf16.msra.mxu0 0
      %732 = vmatpush.bf16.msra.mxu0 0
      %733 = vmatpush.bf16.msra.mxu0 %v713
      %734 = vmatpush.bf16.msra.mxu0 %v710
      %735 = vmatmul.bf16.gmra.mxu0 %v725
      %v736 = vpop.f32.mrf.mxu0
      %v737 = vadd.f32 %v721, %v736
      %v738 = vpop.f32.mrf.mxu0
      %739 = vdwg.mxu0
      %740 = vmatpush.bf16.msra.mxu0 0
      %741 = vmatpush.bf16.msra.mxu0 0
      %742 = vmatpush.bf16.msra.mxu0 0
      %743 = vmatpush.bf16.msra.mxu0 0
      %744 = vmatpush.bf16.msra.mxu0 0
      %745 = vmatpush.bf16.msra.mxu0 0
      %746 = vmatpush.bf16.msra.mxu0 %v714
      %747 = vmatpush.bf16.msra.mxu0 %v711
      %748 = vmatmul.bf16.gmra.mxu0 %v725
      %v749 = vpop.f32.mrf.mxu0
      %v750 = vadd.f32 %v721, %v749
      %v751 = vpop.f32.mrf.mxu0
      %752 = vdwg.mxu0
      %753 = vmatpush.bf16.msra.mxu0 0
      %754 = vmatpush.bf16.msra.mxu0 0
      %755 = vmatpush.bf16.msra.mxu0 0
      %756 = vmatpush.bf16.msra.mxu0 0
      %757 = vmatpush.bf16.msra.mxu0 0
      %758 = vmatpush.bf16.msra.mxu0 0
      %759 = vmatpush.bf16.msra.mxu0 %v715
      %760 = vmatpush.bf16.msra.mxu0 %v712
      %761 = vmatmul.bf16.gmra.mxu0 %v725
      %v762 = vpop.f32.mrf.mxu0
      %v763 = vadd.f32 %v721, %v762
      %v764 = vpop.f32.mrf.mxu0
      %765 = vdwg.mxu0
      %v768 = vrot.slane %v750, 4
      %v769 = vsel %vm450, %v737, %v768
      %771 = vst [vmem:[%s300] sm:$0xff] %v769
      %vm772 = vcmask 257024
      %773 = vst.msk [vmem:[%s300 + $0x8] sm:$0xf] %vm772, %v763
      %s774 = smul.u32 3, %s22
      %p775 = scmp.lt.s32.totalorder %s21, 1
      %s776 = scalar_select %p775, %s21, 1
      %p777 = scmp.lt.s32.totalorder %s774, 2
      %s778 = scalar_select %p777, %s774, 2
      %s779 = smul.addr %s776, 3
      %s780 = sadd.s32 %s778, %s779
      %s781 = smul.addr %s780, 4
      %s782 = scalar_lea.vmem %s6, %s781
      // Predicated region
      $region45: #{unconditional_diffusion_backbone.1} parent=43 // pred_check
        %p783 = pneg %p187
      $region46: #{unconditional_diffusion_backbone.1} parent=43 // pred_check_branch
        %785 = sbr.rel (%p783) target = $region48
      $region47: #{unconditional_diffusion_backbone.1} parent=43 // pred_region
        %s786 = smul.u32 3, %s22
      $region48: #{unconditional_diffusion_backbone.1} parent=43 // pred_fallthru
        _
    $region44: #{unconditional_diffusion_backbone.1} parent=5 // pred_fallthru
      _
    %p787 = scmp.le.s32.totalorder 2, %s12
    // Predicated region
    $region49: #{unconditional_diffusion_backbone.1} parent=5 // pred_check
      %p788 = pneg %p787
    $region50: #{unconditional_diffusion_backbone.1} parent=5 // pred_check_branch
      %790 = sbr.rel (%p788) target = $region52
    $region51: #{unconditional_diffusion_backbone.1} parent=5 // pred_region
      %s791 = ssub.s32 %s12, 2
      // Predicated region
      $region53: #{unconditional_diffusion_backbone.1} parent=51 // pred_check
        %p792 = pneg %p193
      $region54: #{unconditional_diffusion_backbone.1} parent=51 // pred_check_branch
        %794 = sbr.rel (%p792) target = $region56
      $region55: #{unconditional_diffusion_backbone.1} parent=51 // pred_region
        %s795 = smul.u32 3, %s24
        %p796 = scmp.lt.s32.totalorder %s23, 1
        %s797 = scalar_select %p796, %s23, 1
        %p798 = scmp.lt.s32.totalorder %s795, 2
        %s799 = scalar_select %p798, %s795, 2
        %s800 = smul.addr %s797, 3
        %s801 = sadd.s32 %s799, %s800
        %s802 = smul.addr %s801, 4
        %s803 = scalar_lea.vmem %s6, %s802
      $region56: #{unconditional_diffusion_backbone.1} parent=51 // pred_fallthru
        _
    $region52: #{unconditional_diffusion_backbone.1} parent=5 // pred_fallthru
      _
  $region6: #{unconditional_diffusion_backbone.1} parent=0 // loop_footer
    %s16 = sadd.s32 1, %s12
  $region7: #{unconditional_diffusion_backbone.1} parent=0 // loop_footer_branch
    %11 = sbr.rel target = $region3
  $region8: #{unconditional_diffusion_backbone.1} parent=0 // loop_exit
    _

</llo_original>
